<compile_context>
chip_gen: v5e
topology: v5e:2x2
jax: 0.10.0
libtpu: 0.0.40
codegen_flags: <defaults>
</compile_context>

<pallas_src>
import functools

import numpy as np

import jax
import jax.numpy as jnp
from jax import lax
from jax.experimental import pallas as pl
from jax.experimental.pallas import tpu as pltpu


def _bottleneck_kernel(x_ref, s1_ref, b1_ref, w1_ref, b2_ref, w2_ref, m_ref,
                       o_ref, *, nb, W):
    """nb batch images per grid step, channels-on-sublanes layout.

    x_ref  : (nb, Cin, HW)       io dtype   input slab (flattened NCHW)
    s1_ref : (Cin, 1)            f32        folded BN1 scale
    b1_ref : (Cin, 1)            f32        folded BN1 bias
    w1_ref : (Cinter, Cin)       bf16       1x1 conv weight, BN2 scale pre-folded
    b2_ref : (Cinter, 1)         f32        folded BN2 bias
    w2_ref : (Cout, 9*Cinter)    bf16       3x3 weight, column = tap*Cinter + c
    m_ref  : (9, HW)             f32        0/1 zero-padding masks per tap
    o_ref  : (nb, Cin+Cout, HW)  io dtype   [x passthrough ; conv2 output]
    """
    HW = x_ref.shape[2]

    # Hoisted once per grid step (shared by all nb images).
    s1 = s1_ref[...]
    b1 = b1_ref[...]
    w1 = w1_ref[...]
    b2 = b2_ref[...]
    w2 = w2_ref[...]
    tap_masks = [m_ref[t:t + 1, :] for t in range(9)]      # nine (1, HW) f32

    for b in range(nb):
        x = x_ref[b].astype(jnp.float32)                    # (Cin, HW)

        # --- BN1 + ReLU (f32, lane-dense over HW) ---
        t = jnp.maximum(x * s1 + b1, 0.0)

        # --- conv1x1 == channel matmul (bf16 in, f32 acc); BN2 scale folded
        #     into w1, only bias + ReLU remain ---
        h = jnp.dot(w1, t.astype(jnp.bfloat16),
                    preferred_element_type=jnp.float32)      # (Cinter, HW)
        h = jnp.maximum(h + b2, 0.0)

        # --- conv3x3, padding=1: taps via lane-axis roll * constant masks,
        #     kept in registers, one fused K = 9*Cinter matmul ---
        patches = []
        for ki in range(3):
            for kj in range(3):
                dy, dx = ki - 1, kj - 1
                tap = ki * 3 + kj
                if dy == 0 and dx == 0:
                    patch = h
                else:
                    # patch[:, y*W+x] = h[:, (y+dy)*W + (x+dx)], zero outside.
                    shift = (-(dy * W + dx)) % HW
                    patch = pltpu.roll(h, shift=shift, axis=1) * tap_masks[tap]
                patches.append(patch.astype(jnp.bfloat16))
        p = jnp.concatenate(patches, axis=0)                 # (9*Cinter, HW) bf16
        out2 = jnp.dot(w2, p, preferred_element_type=jnp.float32)  # (Cout, HW)

        # --- channel concat, single aligned store per image ---
        o_ref[b] = jnp.concatenate([x, out2], axis=0).astype(o_ref.dtype)


def _tap_masks(H, W):
    """(9, H*W) f32 0/1 validity masks for the 3x3 zero-padded taps."""
    yy, xx = np.meshgrid(np.arange(H), np.arange(W), indexing="ij")
    yy = yy.reshape(-1)
    xx = xx.reshape(-1)
    masks = np.zeros((9, H * W), np.float32)
    for ki in range(3):
        for kj in range(3):
            dy, dx = ki - 1, kj - 1
            ok = ((yy + dy >= 0) & (yy + dy < H) &
                  (xx + dx >= 0) & (xx + dx < W))
            masks[ki * 3 + kj] = ok.astype(np.float32)
    return jnp.asarray(masks)


def _pick_images_per_step(n, max_per_step=8):
    """Largest divisor of n (<= cap) that still leaves >= 2 grid steps (v7x)."""
    best = 1
    for nb in range(1, min(n, max_per_step) + 1):
        if n % nb == 0 and n // nb >= 2:
            best = nb
    return best


def bottleneck_block(x_nchw, params, *, io_dtype=jnp.float32,
                     max_images_per_step=8):
    """Forward pass matching the PyTorch module. NCHW in, NCHW out."""
    (g1, be1, m1, v1, w1_oihw, g2, be2, m2, v2, w2_oihw) = params
    eps = 1e-5

    N, Cin, H, W = x_nchw.shape
    Cinter = w1_oihw.shape[0]
    Cout = w2_oihw.shape[0]
    HW = H * W
    assert HW % 128 == 0, "lane-dense layout requires H*W % 128 == 0"
    # TODO(synk): for large dehaze resolutions, additionally tile the grid over
    # row chunks with a 1-row halo and size the tile for the generation's VMEM
    # (keep per-step VMEM <= ~24 MiB on v7x, ~2x that on v5e/v6e).

    # Fold BN1 (inference) into per-channel scale/bias (f32).
    s1 = (g1 / jnp.sqrt(v1 + eps)).astype(jnp.float32)
    b1 = (be1 - m1 * s1).astype(jnp.float32)
    # Fold BN2 scale into the 1x1 conv weight; keep only its bias.
    s2 = g2 / jnp.sqrt(v2 + eps)
    b2 = (be2 - m2 * s2).astype(jnp.float32)

    w1f = (s2[:, None] * w1_oihw[:, :, 0, 0]).astype(jnp.bfloat16)
    # (Cout, Cinter, 3, 3) -> (Cout, 9*Cinter), column = (ki*3+kj)*Cinter + c.
    w2f = jnp.transpose(w2_oihw, (0, 2, 3, 1)).reshape(Cout, 9 * Cinter)
    w2f = w2f.astype(jnp.bfloat16)

    masks = _tap_masks(H, W)                    # compile-time constant (9, HW)

    # NCHW stays NCHW; only a free flattening reshape (no transposes).
    x2 = x_nchw.reshape(N, Cin, HW).astype(io_dtype)
    s1 = s1.reshape(Cin, 1)
    b1 = b1.reshape(Cin, 1)
    b2 = b2.reshape(Cinter, 1)

    nb = _pick_images_per_step(N, max_images_per_step)
    grid = (N // nb,)

    kernel = functools.partial(_bottleneck_kernel, nb=nb, W=W)

    out = pl.pallas_call(
        kernel,
        out_shape=jax.ShapeDtypeStruct((N, Cin + Cout, HW), io_dtype),
        grid_spec=pltpu.PrefetchScalarGridSpec(
            num_scalar_prefetch=0,
            grid=grid,
            in_specs=[
                pl.BlockSpec((nb, Cin, HW), lambda n: (n, 0, 0)),
                pl.BlockSpec((Cin, 1), lambda n: (0, 0)),
                pl.BlockSpec((Cin, 1), lambda n: (0, 0)),
                pl.BlockSpec((Cinter, Cin), lambda n: (0, 0)),
                pl.BlockSpec((Cinter, 1), lambda n: (0, 0)),
                pl.BlockSpec((Cout, 9 * Cinter), lambda n: (0, 0)),
                pl.BlockSpec((9, HW), lambda n: (0, 0)),
            ],
            out_specs=pl.BlockSpec((nb, Cin + Cout, HW), lambda n: (n, 0, 0)),
        ),
        compiler_params=pltpu.CompilerParams(
            dimension_semantics=("parallel",),
            vmem_limit_bytes=32 * 1024 * 1024),
    )(x2, s1, b1, w1f, b2, w2f, masks)

    # Free reshape back to (N, Cin+Cout, H, W) -- concat already done in-kernel.
    return out.reshape(N, Cin + Cout, H, W)


def _ref_forward(x_nchw, params):
    """Pure-JAX f32 reference (lax.conv) for correctness checking."""
    (g1, be1, m1, v1, w1_oihw, g2, be2, m2, v2, w2_oihw) = params
    eps = 1e-5

    def bn(x, g, b, m, v):
        return (x - m[None, :, None, None]) / jnp.sqrt(
            v[None, :, None, None] + eps) * g[None, :, None, None] \
            + b[None, :, None, None]

    h = jnp.maximum(bn(x_nchw, g1, be1, m1, v1), 0.0)
    h = lax.conv_general_dilated(h, w1_oihw, (1, 1), 'VALID',
                                 dimension_numbers=('NCHW', 'OIHW', 'NCHW'))
    h = jnp.maximum(bn(h, g2, be2, m2, v2), 0.0)
    out = lax.conv_general_dilated(h, w2_oihw, (1, 1), ((1, 1), (1, 1)),
                                   dimension_numbers=('NCHW', 'OIHW', 'NCHW'))
    return jnp.concatenate([x_nchw, out], axis=1)


def _init_params(key, in_planes, out_planes):
    inter_planes = out_planes * 4
    ks = jax.random.split(key, 10)
    g1 = 1.0 + 0.1 * jax.random.normal(ks[0], (in_planes,), jnp.float32)
    be1 = 0.1 * jax.random.normal(ks[1], (in_planes,), jnp.float32)
    m1 = 0.1 * jax.random.normal(ks[2], (in_planes,), jnp.float32)
    v1 = 1.0 + 0.1 * jax.random.uniform(ks[3], (in_planes,), jnp.float32)
    w1 = 0.1 * jax.random.normal(ks[4], (inter_planes, in_planes, 1, 1),
                                 jnp.float32)
    g2 = 1.0 + 0.1 * jax.random.normal(ks[5], (inter_planes,), jnp.float32)
    be2 = 0.1 * jax.random.normal(ks[6], (inter_planes,), jnp.float32)
    m2 = 0.1 * jax.random.normal(ks[7], (inter_planes,), jnp.float32)
    v2 = 1.0 + 0.1 * jax.random.uniform(ks[8], (inter_planes,), jnp.float32)
    w2 = 0.1 * jax.random.normal(ks[9], (out_planes, inter_planes, 3, 3),
                                 jnp.float32)
    return (g1, be1, m1, v1, w1, g2, be2, m2, v2, w2)


if __name__ == "__main__":
    key = jax.random.PRNGKey(0)
    k_x, k_p = jax.random.split(key)

    # N=4 so the batched path (2 images/step) is exercised while keeping a
    # 2-step parallel grid (v7x megacore).
    N, in_planes, out_planes, H, W = 4, 4, 4, 16, 16
    x = jax.random.normal(k_x, (N, in_planes, H, W), jnp.float32)
    params = _init_params(k_p, in_planes, out_planes)

    y_ref = _ref_forward(x, params)

    # f32 I/O path.
    y = jax.block_until_ready(jax.jit(bottleneck_block)(x, params))
    assert y.shape == (N, in_planes + out_planes, H, W), y.shape
    # bf16 MXU operands (f32 accumulation) vs f32 reference -> relaxed tolerance.
    max_err = float(jnp.max(jnp.abs(y - y_ref)))
    assert max_err < 2e-2, max_err

    # bf16 I/O path (HBM-byte reduction when the surrounding DenseNet is bf16).
    y16 = jax.block_until_ready(
        jax.jit(functools.partial(bottleneck_block, io_dtype=jnp.bfloat16))(
            x, params))
    max_err16 = float(jnp.max(jnp.abs(y16.astype(jnp.float32) - y_ref)))
    assert max_err16 < 1e-1, max_err16

    print("KERNEL_OK")
</pallas_src>

<mosaic_0001>
module attributes {stable_mosaic.version = 11 : i64} {
  func.func @_bottleneck_kernel(%arg0: i32, %arg1: memref<2x4x256xf32, #tpu.memory_space<vmem>>, %arg2: memref<4x1xf32, #tpu.memory_space<vmem>>, %arg3: memref<4x1xf32, #tpu.memory_space<vmem>>, %arg4: memref<16x4xbf16, #tpu.memory_space<vmem>>, %arg5: memref<16x1xf32, #tpu.memory_space<vmem>>, %arg6: memref<4x144xbf16, #tpu.memory_space<vmem>>, %arg7: memref<9x256xf32, #tpu.memory_space<vmem>>, %arg8: memref<2x8x256xf32, #tpu.memory_space<vmem>>) attributes {dimension_semantics = [#tpu.dimension_semantics<parallel>], iteration_bounds = array<i64: 2>, scalar_prefetch = 0 : i64, scratch_operands = 0 : i64, tpu.core_type = #tpu.core_type<tc>, window_params = [{transform_indices = @transform_0, window_bounds = array<i64: 2, 4, 256>}, {pipeline_mode = #tpu.pipeline_mode<synchronous>, transform_indices = @transform_1, window_bounds = array<i64: 4, 1>}, {pipeline_mode = #tpu.pipeline_mode<synchronous>, transform_indices = @transform_2, window_bounds = array<i64: 4, 1>}, {pipeline_mode = #tpu.pipeline_mode<synchronous>, transform_indices = @transform_3, window_bounds = array<i64: 16, 4>}, {pipeline_mode = #tpu.pipeline_mode<synchronous>, transform_indices = @transform_4, window_bounds = array<i64: 16, 1>}, {pipeline_mode = #tpu.pipeline_mode<synchronous>, transform_indices = @transform_5, window_bounds = array<i64: 4, 144>}, {pipeline_mode = #tpu.pipeline_mode<synchronous>, transform_indices = @transform_6, window_bounds = array<i64: 9, 256>}, {transform_indices = @transform_7, window_bounds = array<i64: 2, 8, 256>}]} {
    %c0 = arith.constant 0 : index
    %c0_0 = arith.constant 0 : index
    %0 = vector.load %arg2[%c0, %c0_0] : memref<4x1xf32, #tpu.memory_space<vmem>>, vector<4x1xf32>
    %c0_1 = arith.constant 0 : index
    %c0_2 = arith.constant 0 : index
    %1 = vector.load %arg3[%c0_1, %c0_2] : memref<4x1xf32, #tpu.memory_space<vmem>>, vector<4x1xf32>
    %c0_3 = arith.constant 0 : index
    %c0_4 = arith.constant 0 : index
    %2 = vector.load %arg4[%c0_3, %c0_4] : memref<16x4xbf16, #tpu.memory_space<vmem>>, vector<16x4xbf16>
    %c0_5 = arith.constant 0 : index
    %c0_6 = arith.constant 0 : index
    %3 = vector.load %arg5[%c0_5, %c0_6] : memref<16x1xf32, #tpu.memory_space<vmem>>, vector<16x1xf32>
    %c0_7 = arith.constant 0 : index
    %c0_8 = arith.constant 0 : index
    %4 = vector.load %arg6[%c0_7, %c0_8] : memref<4x144xbf16, #tpu.memory_space<vmem>>, vector<4x144xbf16>
    %c0_9 = arith.constant 0 : index
    %c0_10 = arith.constant 0 : index
    %5 = vector.load %arg7[%c0_9, %c0_10] : memref<9x256xf32, #tpu.memory_space<vmem>>, vector<1x256xf32>
    %c1 = arith.constant 1 : index
    %c0_11 = arith.constant 0 : index
    %6 = vector.load %arg7[%c1, %c0_11] : memref<9x256xf32, #tpu.memory_space<vmem>>, vector<1x256xf32>
    %c2 = arith.constant 2 : index
    %c0_12 = arith.constant 0 : index
    %7 = vector.load %arg7[%c2, %c0_12] : memref<9x256xf32, #tpu.memory_space<vmem>>, vector<1x256xf32>
    %c3 = arith.constant 3 : index
    %c0_13 = arith.constant 0 : index
    %8 = vector.load %arg7[%c3, %c0_13] : memref<9x256xf32, #tpu.memory_space<vmem>>, vector<1x256xf32>
    %c5 = arith.constant 5 : index
    %c0_14 = arith.constant 0 : index
    %9 = vector.load %arg7[%c5, %c0_14] : memref<9x256xf32, #tpu.memory_space<vmem>>, vector<1x256xf32>
    %c6 = arith.constant 6 : index
    %c0_15 = arith.constant 0 : index
    %10 = vector.load %arg7[%c6, %c0_15] : memref<9x256xf32, #tpu.memory_space<vmem>>, vector<1x256xf32>
    %c7 = arith.constant 7 : index
    %c0_16 = arith.constant 0 : index
    %11 = vector.load %arg7[%c7, %c0_16] : memref<9x256xf32, #tpu.memory_space<vmem>>, vector<1x256xf32>
    %c8 = arith.constant 8 : index
    %c0_17 = arith.constant 0 : index
    %12 = vector.load %arg7[%c8, %c0_17] : memref<9x256xf32, #tpu.memory_space<vmem>>, vector<1x256xf32>
    %c0_18 = arith.constant 0 : index
    %c0_19 = arith.constant 0 : index
    %c0_20 = arith.constant 0 : index
    %13 = vector.load %arg1[%c0_18, %c0_19, %c0_20] : memref<2x4x256xf32, #tpu.memory_space<vmem>>, vector<1x4x256xf32>
    %14 = vector.shape_cast %13 : vector<1x4x256xf32> to vector<4x256xf32>
    %15 = vector.broadcast %0 : vector<4x1xf32> to vector<4x256xf32>
    %16 = arith.mulf %14, %15 : vector<4x256xf32>
    %17 = vector.broadcast %1 : vector<4x1xf32> to vector<4x256xf32>
    %18 = arith.addf %16, %17 : vector<4x256xf32>
    %cst = arith.constant 0.000000e+00 : f32
    %19 = vector.broadcast %cst : f32 to vector<4x256xf32>
    %20 = arith.maximumf %18, %19 : vector<4x256xf32>
    %21 = arith.truncf %20 : vector<4x256xf32> to vector<4x256xbf16>
    %cst_21 = arith.constant dense<0.000000e+00> : vector<16x256xf32>
    %22 = tpu.matmul %2, %21, %cst_21 {dimension_numbers = #tpu.dot_dimension_numbers<[1], [0], [0], [1], [0, 0, 1, 1], [], []>} : vector<16x4xbf16>, vector<4x256xbf16>, vector<16x256xf32> -> vector<16x256xf32>
    %23 = vector.broadcast %3 : vector<16x1xf32> to vector<16x256xf32>
    %24 = arith.addf %22, %23 : vector<16x256xf32>
    %cst_22 = arith.constant 0.000000e+00 : f32
    %25 = vector.broadcast %cst_22 : f32 to vector<16x256xf32>
    %26 = arith.maximumf %24, %25 : vector<16x256xf32>
    %c17_i32 = arith.constant 17 : i32
    %27 = tpu.dynamic_rotate %26 by %c17_i32 dim 1 : vector<16x256xf32>, i32 -> vector<16x256xf32>
    %28 = vector.broadcast %5 : vector<1x256xf32> to vector<16x256xf32>
    %29 = arith.mulf %27, %28 : vector<16x256xf32>
    %30 = arith.truncf %29 : vector<16x256xf32> to vector<16x256xbf16>
    %c16_i32 = arith.constant 16 : i32
    %31 = tpu.dynamic_rotate %26 by %c16_i32 dim 1 : vector<16x256xf32>, i32 -> vector<16x256xf32>
    %32 = vector.broadcast %6 : vector<1x256xf32> to vector<16x256xf32>
    %33 = arith.mulf %31, %32 : vector<16x256xf32>
    %34 = arith.truncf %33 : vector<16x256xf32> to vector<16x256xbf16>
    %c15_i32 = arith.constant 15 : i32
    %35 = tpu.dynamic_rotate %26 by %c15_i32 dim 1 : vector<16x256xf32>, i32 -> vector<16x256xf32>
    %36 = vector.broadcast %7 : vector<1x256xf32> to vector<16x256xf32>
    %37 = arith.mulf %35, %36 : vector<16x256xf32>
    %38 = arith.truncf %37 : vector<16x256xf32> to vector<16x256xbf16>
    %c1_i32 = arith.constant 1 : i32
    %39 = tpu.dynamic_rotate %26 by %c1_i32 dim 1 : vector<16x256xf32>, i32 -> vector<16x256xf32>
    %40 = vector.broadcast %8 : vector<1x256xf32> to vector<16x256xf32>
    %41 = arith.mulf %39, %40 : vector<16x256xf32>
    %42 = arith.truncf %41 : vector<16x256xf32> to vector<16x256xbf16>
    %43 = arith.truncf %26 : vector<16x256xf32> to vector<16x256xbf16>
    %c255_i32 = arith.constant 255 : i32
    %44 = tpu.dynamic_rotate %26 by %c255_i32 dim 1 : vector<16x256xf32>, i32 -> vector<16x256xf32>
    %45 = vector.broadcast %9 : vector<1x256xf32> to vector<16x256xf32>
    %46 = arith.mulf %44, %45 : vector<16x256xf32>
    %47 = arith.truncf %46 : vector<16x256xf32> to vector<16x256xbf16>
    %c241_i32 = arith.constant 241 : i32
    %48 = tpu.dynamic_rotate %26 by %c241_i32 dim 1 : vector<16x256xf32>, i32 -> vector<16x256xf32>
    %49 = vector.broadcast %10 : vector<1x256xf32> to vector<16x256xf32>
    %50 = arith.mulf %48, %49 : vector<16x256xf32>
    %51 = arith.truncf %50 : vector<16x256xf32> to vector<16x256xbf16>
    %c240_i32 = arith.constant 240 : i32
    %52 = tpu.dynamic_rotate %26 by %c240_i32 dim 1 : vector<16x256xf32>, i32 -> vector<16x256xf32>
    %53 = vector.broadcast %11 : vector<1x256xf32> to vector<16x256xf32>
    %54 = arith.mulf %52, %53 : vector<16x256xf32>
    %55 = arith.truncf %54 : vector<16x256xf32> to vector<16x256xbf16>
    %c239_i32 = arith.constant 239 : i32
    %56 = tpu.dynamic_rotate %26 by %c239_i32 dim 1 : vector<16x256xf32>, i32 -> vector<16x256xf32>
    %57 = vector.broadcast %12 : vector<1x256xf32> to vector<16x256xf32>
    %58 = arith.mulf %56, %57 : vector<16x256xf32>
    %59 = arith.truncf %58 : vector<16x256xf32> to vector<16x256xbf16>
    %60 = tpu.concatenate %30, %34, %38, %42, %43, %47, %51, %55, %59 in 0 : vector<16x256xbf16>, vector<16x256xbf16>, vector<16x256xbf16>, vector<16x256xbf16>, vector<16x256xbf16>, vector<16x256xbf16>, vector<16x256xbf16>, vector<16x256xbf16>, vector<16x256xbf16> -> vector<144x256xbf16>
    %cst_23 = arith.constant dense<0.000000e+00> : vector<4x256xf32>
    %61 = tpu.matmul %4, %60, %cst_23 {dimension_numbers = #tpu.dot_dimension_numbers<[1], [0], [0], [1], [0, 0, 1, 1], [], []>} : vector<4x144xbf16>, vector<144x256xbf16>, vector<4x256xf32> -> vector<4x256xf32>
    %62 = tpu.concatenate %14, %61 in 0 : vector<4x256xf32>, vector<4x256xf32> -> vector<8x256xf32>
    %c0_24 = arith.constant 0 : index
    %c0_25 = arith.constant 0 : index
    %c0_26 = arith.constant 0 : index
    %63 = vector.load %arg8[%c0_24, %c0_25, %c0_26] : memref<2x8x256xf32, #tpu.memory_space<vmem>>, vector<1x8x256xf32>
    %64 = vector.shape_cast %63 : vector<1x8x256xf32> to vector<8x256xf32>
    %65 = vector.shape_cast %62 : vector<8x256xf32> to vector<1x8x256xf32>
    tpu.vector_store %arg8[%c0_24, %c0_25, %c0_26], %65 {strides = array<i32>} : memref<2x8x256xf32, #tpu.memory_space<vmem>>, vector<1x8x256xf32>,
    %c1_27 = arith.constant 1 : index
    %c0_28 = arith.constant 0 : index
    %c0_29 = arith.constant 0 : index
    %66 = vector.load %arg1[%c1_27, %c0_28, %c0_29] : memref<2x4x256xf32, #tpu.memory_space<vmem>>, vector<1x4x256xf32>
    %67 = vector.shape_cast %66 : vector<1x4x256xf32> to vector<4x256xf32>
    %68 = vector.broadcast %0 : vector<4x1xf32> to vector<4x256xf32>
    %69 = arith.mulf %67, %68 : vector<4x256xf32>
    %70 = vector.broadcast %1 : vector<4x1xf32> to vector<4x256xf32>
    %71 = arith.addf %69, %70 : vector<4x256xf32>
    %cst_30 = arith.constant 0.000000e+00 : f32
    %72 = vector.broadcast %cst_30 : f32 to vector<4x256xf32>
    %73 = arith.maximumf %71, %72 : vector<4x256xf32>
    %74 = arith.truncf %73 : vector<4x256xf32> to vector<4x256xbf16>
    %cst_31 = arith.constant dense<0.000000e+00> : vector<16x256xf32>
    %75 = tpu.matmul %2, %74, %cst_31 {dimension_numbers = #tpu.dot_dimension_numbers<[1], [0], [0], [1], [0, 0, 1, 1], [], []>} : vector<16x4xbf16>, vector<4x256xbf16>, vector<16x256xf32> -> vector<16x256xf32>
    %76 = vector.broadcast %3 : vector<16x1xf32> to vector<16x256xf32>
    %77 = arith.addf %75, %76 : vector<16x256xf32>
    %cst_32 = arith.constant 0.000000e+00 : f32
    %78 = vector.broadcast %cst_32 : f32 to vector<16x256xf32>
    %79 = arith.maximumf %77, %78 : vector<16x256xf32>
    %c17_i32_33 = arith.constant 17 : i32
    %80 = tpu.dynamic_rotate %79 by %c17_i32_33 dim 1 : vector<16x256xf32>, i32 -> vector<16x256xf32>
    %81 = vector.broadcast %5 : vector<1x256xf32> to vector<16x256xf32>
    %82 = arith.mulf %80, %81 : vector<16x256xf32>
    %83 = arith.truncf %82 : vector<16x256xf32> to vector<16x256xbf16>
    %c16_i32_34 = arith.constant 16 : i32
    %84 = tpu.dynamic_rotate %79 by %c16_i32_34 dim 1 : vector<16x256xf32>, i32 -> vector<16x256xf32>
    %85 = vector.broadcast %6 : vector<1x256xf32> to vector<16x256xf32>
    %86 = arith.mulf %84, %85 : vector<16x256xf32>
    %87 = arith.truncf %86 : vector<16x256xf32> to vector<16x256xbf16>
    %c15_i32_35 = arith.constant 15 : i32
    %88 = tpu.dynamic_rotate %79 by %c15_i32_35 dim 1 : vector<16x256xf32>, i32 -> vector<16x256xf32>
    %89 = vector.broadcast %7 : vector<1x256xf32> to vector<16x256xf32>
    %90 = arith.mulf %88, %89 : vector<16x256xf32>
    %91 = arith.truncf %90 : vector<16x256xf32> to vector<16x256xbf16>
    %c1_i32_36 = arith.constant 1 : i32
    %92 = tpu.dynamic_rotate %79 by %c1_i32_36 dim 1 : vector<16x256xf32>, i32 -> vector<16x256xf32>
    %93 = vector.broadcast %8 : vector<1x256xf32> to vector<16x256xf32>
    %94 = arith.mulf %92, %93 : vector<16x256xf32>
    %95 = arith.truncf %94 : vector<16x256xf32> to vector<16x256xbf16>
    %96 = arith.truncf %79 : vector<16x256xf32> to vector<16x256xbf16>
    %c255_i32_37 = arith.constant 255 : i32
    %97 = tpu.dynamic_rotate %79 by %c255_i32_37 dim 1 : vector<16x256xf32>, i32 -> vector<16x256xf32>
    %98 = vector.broadcast %9 : vector<1x256xf32> to vector<16x256xf32>
    %99 = arith.mulf %97, %98 : vector<16x256xf32>
    %100 = arith.truncf %99 : vector<16x256xf32> to vector<16x256xbf16>
    %c241_i32_38 = arith.constant 241 : i32
    %101 = tpu.dynamic_rotate %79 by %c241_i32_38 dim 1 : vector<16x256xf32>, i32 -> vector<16x256xf32>
    %102 = vector.broadcast %10 : vector<1x256xf32> to vector<16x256xf32>
    %103 = arith.mulf %101, %102 : vector<16x256xf32>
    %104 = arith.truncf %103 : vector<16x256xf32> to vector<16x256xbf16>
    %c240_i32_39 = arith.constant 240 : i32
    %105 = tpu.dynamic_rotate %79 by %c240_i32_39 dim 1 : vector<16x256xf32>, i32 -> vector<16x256xf32>
    %106 = vector.broadcast %11 : vector<1x256xf32> to vector<16x256xf32>
    %107 = arith.mulf %105, %106 : vector<16x256xf32>
    %108 = arith.truncf %107 : vector<16x256xf32> to vector<16x256xbf16>
    %c239_i32_40 = arith.constant 239 : i32
    %109 = tpu.dynamic_rotate %79 by %c239_i32_40 dim 1 : vector<16x256xf32>, i32 -> vector<16x256xf32>
    %110 = vector.broadcast %12 : vector<1x256xf32> to vector<16x256xf32>
    %111 = arith.mulf %109, %110 : vector<16x256xf32>
    %112 = arith.truncf %111 : vector<16x256xf32> to vector<16x256xbf16>
    %113 = tpu.concatenate %83, %87, %91, %95, %96, %100, %104, %108, %112 in 0 : vector<16x256xbf16>, vector<16x256xbf16>, vector<16x256xbf16>, vector<16x256xbf16>, vector<16x256xbf16>, vector<16x256xbf16>, vector<16x256xbf16>, vector<16x256xbf16>, vector<16x256xbf16> -> vector<144x256xbf16>
    %cst_41 = arith.constant dense<0.000000e+00> : vector<4x256xf32>
    %114 = tpu.matmul %4, %113, %cst_41 {dimension_numbers = #tpu.dot_dimension_numbers<[1], [0], [0], [1], [0, 0, 1, 1], [], []>} : vector<4x144xbf16>, vector<144x256xbf16>, vector<4x256xf32> -> vector<4x256xf32>
    %115 = tpu.concatenate %67, %114 in 0 : vector<4x256xf32>, vector<4x256xf32> -> vector<8x256xf32>
    %c1_42 = arith.constant 1 : index
    %c0_43 = arith.constant 0 : index
    %c0_44 = arith.constant 0 : index
    %116 = vector.load %arg8[%c1_42, %c0_43, %c0_44] : memref<2x8x256xf32, #tpu.memory_space<vmem>>, vector<1x8x256xf32>
    %117 = vector.shape_cast %116 : vector<1x8x256xf32> to vector<8x256xf32>
    %118 = vector.shape_cast %115 : vector<8x256xf32> to vector<1x8x256xf32>
    tpu.vector_store %arg8[%c1_42, %c0_43, %c0_44], %118 {strides = array<i32>} : memref<2x8x256xf32, #tpu.memory_space<vmem>>, vector<1x8x256xf32>,
    return
  }
  func.func @transform_0(%arg0: i32) -> (i32, i32, i32) {
    %c0_i32 = arith.constant 0 : i32
    %c0_i32_0 = arith.constant 0 : i32
    %c0_i32_1 = arith.constant 0 : i32
    return %arg0, %c0_i32, %c0_i32_0 : i32, i32, i32
  }
  func.func @transform_1(%arg0: i32) -> (i32, i32) {
    %c0_i32 = arith.constant 0 : i32
    %c0_i32_0 = arith.constant 0 : i32
    %c0_i32_1 = arith.constant 0 : i32
    return %c0_i32, %c0_i32_0 : i32, i32
  }
  func.func @transform_2(%arg0: i32) -> (i32, i32) {
    %c0_i32 = arith.constant 0 : i32
    %c0_i32_0 = arith.constant 0 : i32
    %c0_i32_1 = arith.constant 0 : i32
    return %c0_i32, %c0_i32_0 : i32, i32
  }
  func.func @transform_3(%arg0: i32) -> (i32, i32) {
    %c0_i32 = arith.constant 0 : i32
    %c0_i32_0 = arith.constant 0 : i32
    %c0_i32_1 = arith.constant 0 : i32
    return %c0_i32, %c0_i32_0 : i32, i32
  }
  func.func @transform_4(%arg0: i32) -> (i32, i32) {
    %c0_i32 = arith.constant 0 : i32
    %c0_i32_0 = arith.constant 0 : i32
    %c0_i32_1 = arith.constant 0 : i32
    return %c0_i32, %c0_i32_0 : i32, i32
  }
  func.func @transform_5(%arg0: i32) -> (i32, i32) {
    %c0_i32 = arith.constant 0 : i32
    %c0_i32_0 = arith.constant 0 : i32
    %c0_i32_1 = arith.constant 0 : i32
    return %c0_i32, %c0_i32_0 : i32, i32
  }
  func.func @transform_6(%arg0: i32) -> (i32, i32) {
    %c0_i32 = arith.constant 0 : i32
    %c0_i32_0 = arith.constant 0 : i32
    %c0_i32_1 = arith.constant 0 : i32
    return %c0_i32, %c0_i32_0 : i32, i32
  }
  func.func @transform_7(%arg0: i32) -> (i32, i32, i32) {
    %c0_i32 = arith.constant 0 : i32
    %c0_i32_0 = arith.constant 0 : i32
    %c0_i32_1 = arith.constant 0 : i32
    return %arg0, %c0_i32, %c0_i32_0 : i32, i32, i32
  }
}

</mosaic_0001>

<llo_original>
// kernel: bottleneck_block.1
$region0: #{bottleneck_block.1}
  #allocation0 [shape = 'u32[]', space=smem, size = 0x4, offset = 0x4, fixed_abs, tag = 'smem constant byte address 0x4 - core index']
  #allocation1 [shape = 'u32[72,128]{1,0:T(1,128)}', space=vmem, size = 0x9000, scoped, tag = 'internal scratch']
  %s0 = inlined_call_operand.vmem [shape: f32[4,4,256], index: 0, kind: input, shape index: {}]
  %s1 = inlined_call_operand.vmem [shape: f32[4,1], index: 1, kind: input, shape index: {}]
  %s2 = inlined_call_operand.vmem [shape: f32[4,1], index: 2, kind: input, shape index: {}]
  %s3 = inlined_call_operand.vmem [shape: bf16[16,4], index: 3, kind: input, shape index: {}]
  %s4 = inlined_call_operand.vmem [shape: f32[16,1], index: 4, kind: input, shape index: {}]
  %s5 = inlined_call_operand.vmem [shape: bf16[4,144], index: 5, kind: input, shape index: {}]
  %s6 = inlined_call_operand.vmem [shape: f32[9,256], index: 6, kind: input, shape index: {}]
  %s7 = inlined_call_operand.vmem [shape: f32[4,8,256], index: 7, kind: output, shape index: {}]
  %s8 = sld [smem:[#allocation0]]
  $region61: #{bottleneck_block.1} parent=0
    _
  %s10 = ssub.s32 1, %s8
  %s11 = scalar_select 0, %s10, %s8
  loop: start=0, step=1, limit=4
  $region2: #{bottleneck_block.1} parent=0 // loop_pre_header
    _
  $region3: #{bottleneck_block.1} parent=0 // loop_header
    %s13 = sphi 0, %s17
    %p14 = scmp.ge.s32.totalorder %s13, 4
    %s23 = sphi 0, %s25
    %s26 = sphi 0, %s23
    %s27 = sphi 0, %s26
    %s43 = sphi 0, %s27
    %s47 = sphi 0, %s47
    %s49 = sphi 0, %s47
    %s50 = sphi 0, %s49
    %s64 = sphi 0, %s50
    %s68 = sphi 0, %s68
    %s70 = sphi 0, %s68
    %s71 = sphi 0, %s70
    %s85 = sphi 0, %s71
    %s89 = sphi 0, %s89
    %s91 = sphi 0, %s89
    %s92 = sphi 0, %s91
    %s106 = sphi 0, %s92
    %s110 = sphi 0, %s110
    %s112 = sphi 0, %s110
    %s113 = sphi 0, %s112
    %s127 = sphi 0, %s113
    %s131 = sphi 0, %s131
    %s133 = sphi 0, %s131
    %s134 = sphi 0, %s133
    %s148 = sphi 0, %s134
    %s152 = sphi 0, %s152
    %s154 = sphi 0, %s152
    %s155 = sphi 0, %s154
    %s169 = sphi 0, %s155
    %s175 = sphi 0, %s177
    %s178 = sphi 0, %s175
    %s179 = sphi 0, %s178
    %s195 = sphi 0, %s179
  $region4: #{bottleneck_block.1} parent=0 // loop_header_branch
    %16 = sbr.rel (%p14) target = $region8
  $region5: #{bottleneck_block.1} parent=0 // loop_body
    %s18 = ssub.s32 %s13, 1
    %s19 = ssub.s32 %s13, 2
    %s20 = sadd.s32 %s13, 1
    %s21 = ssub.s32 %s13, %s20
    %p22 = scmp.eq.s32.totalorder %s21, 0
    %s24 = sadd.s32 %s23, 1
    %s25 = scalar_select %p22, %s23, %s24
    %p28 = pneg %p22
    %p29 = scmp.eq.s32.totalorder %s13, 1
    %p30 = por %p28, %p29
    %p31 = scmp.ne.s32.totalorder %s23, %s26
    %p32 = scmp.eq.s32.totalorder %s13, 0
    %p33 = por %p31, %p32
    %p34 = scmp.ne.s32.totalorder %s23, %s26
    %p35 = scmp.eq.s32.totalorder %s18, 1
    %p36 = por %p34, %p35
    %p37 = scmp.ne.s32.totalorder %s26, %s27
    %p38 = scmp.eq.s32.totalorder %s18, 0
    %p39 = por %p37, %p38
    %p40 = scmp.ne.s32.totalorder %s26, %s27
    %p41 = scmp.eq.s32.totalorder %s19, 1
    %p42 = por %p40, %p41
    %p44 = scmp.ne.s32.totalorder %s27, %s43
    %p45 = scmp.eq.s32.totalorder %s19, 0
    %p46 = por %p44, %p45
    %s48 = sadd.s32 %s47, 1
    %p51 = scmp.eq.s32.totalorder %s13, 1
    %p52 = scmp.ne.s32.totalorder %s47, %s49
    %p53 = scmp.eq.s32.totalorder %s13, 0
    %p54 = por %p52, %p53
    %p55 = scmp.ne.s32.totalorder %s47, %s49
    %p56 = scmp.eq.s32.totalorder %s18, 1
    %p57 = por %p55, %p56
    %p58 = scmp.ne.s32.totalorder %s49, %s50
    %p59 = scmp.eq.s32.totalorder %s18, 0
    %p60 = por %p58, %p59
    %p61 = scmp.ne.s32.totalorder %s49, %s50
    %p62 = scmp.eq.s32.totalorder %s19, 1
    %p63 = por %p61, %p62
    %p65 = scmp.ne.s32.totalorder %s50, %s64
    %p66 = scmp.eq.s32.totalorder %s19, 0
    %p67 = por %p65, %p66
    %s69 = sadd.s32 %s68, 1
    %p72 = scmp.eq.s32.totalorder %s13, 1
    %p73 = scmp.ne.s32.totalorder %s68, %s70
    %p74 = scmp.eq.s32.totalorder %s13, 0
    %p75 = por %p73, %p74
    %p76 = scmp.ne.s32.totalorder %s68, %s70
    %p77 = scmp.eq.s32.totalorder %s18, 1
    %p78 = por %p76, %p77
    %p79 = scmp.ne.s32.totalorder %s70, %s71
    %p80 = scmp.eq.s32.totalorder %s18, 0
    %p81 = por %p79, %p80
    %p82 = scmp.ne.s32.totalorder %s70, %s71
    %p83 = scmp.eq.s32.totalorder %s19, 1
    %p84 = por %p82, %p83
    %p86 = scmp.ne.s32.totalorder %s71, %s85
    %p87 = scmp.eq.s32.totalorder %s19, 0
    %p88 = por %p86, %p87
    %s90 = sadd.s32 %s89, 1
    %p93 = scmp.eq.s32.totalorder %s13, 1
    %p94 = scmp.ne.s32.totalorder %s89, %s91
    %p95 = scmp.eq.s32.totalorder %s13, 0
    %p96 = por %p94, %p95
    %p97 = scmp.ne.s32.totalorder %s89, %s91
    %p98 = scmp.eq.s32.totalorder %s18, 1
    %p99 = por %p97, %p98
    %p100 = scmp.ne.s32.totalorder %s91, %s92
    %p101 = scmp.eq.s32.totalorder %s18, 0
    %p102 = por %p100, %p101
    %p103 = scmp.ne.s32.totalorder %s91, %s92
    %p104 = scmp.eq.s32.totalorder %s19, 1
    %p105 = por %p103, %p104
    %p107 = scmp.ne.s32.totalorder %s92, %s106
    %p108 = scmp.eq.s32.totalorder %s19, 0
    %p109 = por %p107, %p108
    %s111 = sadd.s32 %s110, 1
    %p114 = scmp.eq.s32.totalorder %s13, 1
    %p115 = scmp.ne.s32.totalorder %s110, %s112
    %p116 = scmp.eq.s32.totalorder %s13, 0
    %p117 = por %p115, %p116
    %p118 = scmp.ne.s32.totalorder %s110, %s112
    %p119 = scmp.eq.s32.totalorder %s18, 1
    %p120 = por %p118, %p119
    %p121 = scmp.ne.s32.totalorder %s112, %s113
    %p122 = scmp.eq.s32.totalorder %s18, 0
    %p123 = por %p121, %p122
    %p124 = scmp.ne.s32.totalorder %s112, %s113
    %p125 = scmp.eq.s32.totalorder %s19, 1
    %p126 = por %p124, %p125
    %p128 = scmp.ne.s32.totalorder %s113, %s127
    %p129 = scmp.eq.s32.totalorder %s19, 0
    %p130 = por %p128, %p129
    %s132 = sadd.s32 %s131, 1
    %p135 = scmp.eq.s32.totalorder %s13, 1
    %p136 = scmp.ne.s32.totalorder %s131, %s133
    %p137 = scmp.eq.s32.totalorder %s13, 0
    %p138 = por %p136, %p137
    %p139 = scmp.ne.s32.totalorder %s131, %s133
    %p140 = scmp.eq.s32.totalorder %s18, 1
    %p141 = por %p139, %p140
    %p142 = scmp.ne.s32.totalorder %s133, %s134
    %p143 = scmp.eq.s32.totalorder %s18, 0
    %p144 = por %p142, %p143
    %p145 = scmp.ne.s32.totalorder %s133, %s134
    %p146 = scmp.eq.s32.totalorder %s19, 1
    %p147 = por %p145, %p146
    %p149 = scmp.ne.s32.totalorder %s134, %s148
    %p150 = scmp.eq.s32.totalorder %s19, 0
    %p151 = por %p149, %p150
    %s153 = sadd.s32 %s152, 1
    %p156 = scmp.eq.s32.totalorder %s13, 1
    %p157 = scmp.ne.s32.totalorder %s152, %s154
    %p158 = scmp.eq.s32.totalorder %s13, 0
    %p159 = por %p157, %p158
    %p160 = scmp.ne.s32.totalorder %s152, %s154
    %p161 = scmp.eq.s32.totalorder %s18, 1
    %p162 = por %p160, %p161
    %p163 = scmp.ne.s32.totalorder %s154, %s155
    %p164 = scmp.eq.s32.totalorder %s18, 0
    %p165 = por %p163, %p164
    %p166 = scmp.ne.s32.totalorder %s154, %s155
    %p167 = scmp.eq.s32.totalorder %s19, 1
    %p168 = por %p166, %p167
    %p170 = scmp.ne.s32.totalorder %s155, %s169
    %p171 = scmp.eq.s32.totalorder %s19, 0
    %p172 = por %p170, %p171
    %s173 = ssub.s32 %s13, %s20
    %p174 = scmp.eq.s32.totalorder %s173, 0
    %s176 = sadd.s32 %s175, 1
    %s177 = scalar_select %p174, %s175, %s176
    %p180 = pneg %p174
    %p181 = scmp.eq.s32.totalorder %s13, 1
    %p182 = por %p180, %p181
    %p183 = scmp.ne.s32.totalorder %s175, %s178
    %p184 = scmp.eq.s32.totalorder %s13, 0
    %p185 = por %p183, %p184
    %p186 = scmp.ne.s32.totalorder %s175, %s178
    %p187 = scmp.eq.s32.totalorder %s18, 1
    %p188 = por %p186, %p187
    %p189 = scmp.ne.s32.totalorder %s178, %s179
    %p190 = scmp.eq.s32.totalorder %s18, 0
    %p191 = por %p189, %p190
    %p192 = scmp.ne.s32.totalorder %s178, %s179
    %p193 = scmp.eq.s32.totalorder %s19, 1
    %p194 = por %p192, %p193
    %p196 = scmp.ne.s32.totalorder %s179, %s195
    %p197 = scmp.eq.s32.totalorder %s19, 0
    %p198 = por %p196, %p197
    %p199 = scmp.le.s32.totalorder 1, %s13
    %p200 = scmp.lt.s32.totalorder %s13, 3
    %p201 = pnand %p199, %p200
    %p202 = pneg %p201
    // Predicated region
    $region9: #{bottleneck_block.1} parent=5 // pred_check
      _
    $region10: #{bottleneck_block.1} parent=5 // pred_check_branch
      %204 = sbr.rel (%p201) target = $region12
    $region11: #{bottleneck_block.1} parent=5 // pred_region
      %s205 = ssub.s32 %s13, 1
      // Predicated region
      $region13: #{bottleneck_block.1} parent=11 // pred_check
        %p206 = pneg %p60
      $region14: #{bottleneck_block.1} parent=11 // pred_check_branch
        %208 = sbr.rel (%p206) target = $region16
      $region15: #{bottleneck_block.1} parent=11 // pred_region
        _
      $region16: #{bottleneck_block.1} parent=11 // pred_fallthru
        _
      // Predicated region
      $region17: #{bottleneck_block.1} parent=11 // pred_check
        %p209 = pneg %p81
      $region18: #{bottleneck_block.1} parent=11 // pred_check_branch
        %211 = sbr.rel (%p209) target = $region20
      $region19: #{bottleneck_block.1} parent=11 // pred_region
        _
      $region20: #{bottleneck_block.1} parent=11 // pred_fallthru
        _
      // Predicated region
      $region21: #{bottleneck_block.1} parent=11 // pred_check
        %p212 = pneg %p102
      $region22: #{bottleneck_block.1} parent=11 // pred_check_branch
        %214 = sbr.rel (%p212) target = $region24
      $region23: #{bottleneck_block.1} parent=11 // pred_region
        _
      $region24: #{bottleneck_block.1} parent=11 // pred_fallthru
        _
      // Predicated region
      $region25: #{bottleneck_block.1} parent=11 // pred_check
        %p215 = pneg %p123
      $region26: #{bottleneck_block.1} parent=11 // pred_check_branch
        %217 = sbr.rel (%p215) target = $region28
      $region27: #{bottleneck_block.1} parent=11 // pred_region
        _
      $region28: #{bottleneck_block.1} parent=11 // pred_fallthru
        _
      // Predicated region
      $region29: #{bottleneck_block.1} parent=11 // pred_check
        %p218 = pneg %p144
      $region30: #{bottleneck_block.1} parent=11 // pred_check_branch
        %220 = sbr.rel (%p218) target = $region32
      $region31: #{bottleneck_block.1} parent=11 // pred_region
        _
      $region32: #{bottleneck_block.1} parent=11 // pred_fallthru
        _
      // Predicated region
      $region33: #{bottleneck_block.1} parent=11 // pred_check
        %p221 = pneg %p165
      $region34: #{bottleneck_block.1} parent=11 // pred_check_branch
        %223 = sbr.rel (%p221) target = $region36
      $region35: #{bottleneck_block.1} parent=11 // pred_region
        _
      $region36: #{bottleneck_block.1} parent=11 // pred_fallthru
        _
    $region12: #{bottleneck_block.1} parent=5 // pred_fallthru
      _
    %p224 = scmp.lt.s32.totalorder %s13, 2
    // Predicated region
    $region37: #{bottleneck_block.1} parent=5 // pred_check
      %p225 = pneg %p224
    $region38: #{bottleneck_block.1} parent=5 // pred_check_branch
      %227 = sbr.rel (%p225) target = $region40
    $region39: #{bottleneck_block.1} parent=5 // pred_region
      // Predicated region
      $region41: #{bottleneck_block.1} parent=39 // pred_check
        %p228 = pneg %p33
      $region42: #{bottleneck_block.1} parent=39 // pred_check_branch
        %230 = sbr.rel (%p228) target = $region44
      $region43: #{bottleneck_block.1} parent=39 // pred_region
        %s231 = smul.u32 2, %s13
        %p232 = scmp.lt.s32.totalorder %s231, 3
        %s233 = scalar_select %p232, %s231, 3
        %s234 = smul.addr %s233, 2
        %s235 = smul.addr %s234, 4
        %s236 = scalar_lea.vmem %s0, %s235
        %s237 = smul.u32 2, %s13
      $region44: #{bottleneck_block.1} parent=39 // pred_fallthru
        _
    $region40: #{bottleneck_block.1} parent=5 // pred_fallthru
      _
    %p238 = scmp.le.s32.totalorder 1, %s13
    %p239 = scmp.lt.s32.totalorder %s13, 3
    %p240 = pnand %p238, %p239
    %p241 = pneg %p240
    // Predicated region
    $region45: #{bottleneck_block.1} parent=5 // pred_check
      _
    $region46: #{bottleneck_block.1} parent=5 // pred_check_branch
      %243 = sbr.rel (%p240) target = $region48
    $region47: #{bottleneck_block.1} parent=5 // pred_region
      %s244 = ssub.s32 %s13, 1
      %s245 = smul.u32 2, %s18
      %p246 = scmp.lt.s32.totalorder %s245, 3
      %s247 = scalar_select %p246, %s245, 3
      %s248 = smul.addr %s247, 2
      %s249 = smul.addr %s248, 4
      %s250 = scalar_lea.vmem %s0, %s249
      %p251 = pneg %p39
      %p252 = pneg %p36
      %p253 = pneg %p60
      %p254 = pneg %p57
      %p255 = pneg %p81
      %p256 = pneg %p78
      %p257 = pneg %p102
      %p258 = pneg %p99
      %p259 = pneg %p123
      %p260 = pneg %p120
      %p261 = pneg %p144
      %p262 = pneg %p141
      %p263 = pneg %p165
      %p264 = pneg %p162
      %p265 = pneg %p191
      %p266 = pneg %p188
      %s267 = smul.u32 2, %s18
      %p268 = scmp.lt.s32.totalorder %s267, 3
      %s269 = scalar_select %p268, %s267, 3
      %s270 = smul.addr %s269, 2
      %s271 = smul.addr %s270, 8
      %s272 = scalar_lea.vmem %s7, %s271
      %s273 = smul.u32 2, %s18
      %p274 = scmp.lt.s32.totalorder %s273, 3
      %s275 = scalar_select %p274, %s273, 3
      %s276 = smul.addr %s275, 2
      %s277 = smul.addr %s276, 4
      %s278 = scalar_lea.vmem %s0, %s277
      %s279 = smul.u32 2, %s18
      %s280 = smul.u32 2, %s18
      %p281 = scmp.lt.s32.totalorder %s280, 3
      %s282 = scalar_select %p281, %s280, 3
      %s283 = smul.addr %s282, 2
      %s284 = smul.addr %s283, 8
      %s285 = scalar_lea.vmem %s7, %s284
      %s286 = smul.u32 2, %s18
      %v288 = vld [vmem:[%s1] sm:$0xf]
      %v289 = vld [vmem:[%s2] sm:$0xf]
      %v290 = vld [vmem:[%s3] sm:$0xf]
      %v291 = vld [vmem:[%s3 + $0x4] sm:$0xf]
      %v292 = vld [vmem:[%s4] sm:$0xff]
      %v293 = vld [vmem:[%s4 + $0x8] sm:$0xff]
      %v294 = vld [vmem:[%s5] sm:$0xf]
      %v295 = vld [vmem:[%s6] ss:$8 sm:$0x3]
      %s296 = scalar_lea.vmem %s6, 1
      %v297 = vld [vmem:[%s296] ss:$8 sm:$0x3]
      %s298 = scalar_lea.vmem %s6, 2
      %v299 = vld [vmem:[%s298] ss:$8 sm:$0x3]
      %s300 = scalar_lea.vmem %s6, 3
      %v301 = vld [vmem:[%s300] ss:$8 sm:$0x3]
      %s302 = scalar_lea.vmem %s6, 5
      %v303 = vld [vmem:[%s302] ss:$8 sm:$0x3]
      %s304 = scalar_lea.vmem %s6, 6
      %v305 = vld [vmem:[%s304] ss:$8 sm:$0x3]
      %s306 = scalar_lea.vmem %s6, 7
      %v307 = vld [vmem:[%s306] ss:$8 sm:$0x3]
      %s308 = scalar_lea.vmem %s6, 16
      %v309 = vld [vmem:[%s308] ss:$8 sm:$0x3]
      %v310 = vld [vmem:[%s278] sm:$0xff]
      %312 = vset.pattern.permute.xlu0 0
      %313 = vperm.xlu0 %312, %v288
      %v314 = vpop.permute.xlu0 %313
      %v316 = vunpack.c.l.s4 839922192
      %v317 = vunpack.c.0.s8 %v316
      %v318 = vperm.slane %v314, %v317
      %v320 = vmul.f32 %v310, %v318
      %322 = vset.pattern.permute.xlu0 0
      %323 = vperm.xlu0 %322, %v289
      %v324 = vpop.permute.xlu0 %323
      %v326 = vunpack.c.l.s4 839922192
      %v327 = vunpack.c.0.s8 %v326
      %v328 = vperm.slane %v324, %v327
      %v330 = vadd.f32 %v320, %v328
      %v331 = vmax.f32 %v330, 0.0
      %333 = vst [vmem:[#allocation1] ss:$2 sm:$0xff] %v331
      %v334 = vld.sshfl [vmem:[#allocation1] sm:$0xff pattern:$0x75316420]
      %v335 = vld.sshfl [vmem:[#allocation1 + $0x8] sm:$0xff pattern:$0x75316420]
      %v338 = vpack.c.bf16 %v334, %v334
      %v339 = vpack.c.bf16 %v335, %v335
      %341 = vset.pattern.permute.xlu0 0
      %342 = vperm.xlu0 %341, %v292
      %v343 = vpop.permute.xlu0 %342
      %346 = vset.pattern.permute.xlu0 0
      %347 = vperm.xlu0 %346, %v293
      %v348 = vpop.permute.xlu0 %347
      %v352 = vunpack.c.l.b16 %v290
      %v353 = vunpack.c.l.b16 %v291
      %v354 = vpack.c.b16 %v353, %v352
      %vm355 = vcmask 31744
      %v357 = vsel %vm355, %v354, 0
      %vm359 = vcmask 1041408
      %v361 = vsel %vm359, %v338, 0
      %v364 = vsel %vm359, %v339, 0
      %366 = vmatpush.bf16.msra.mxu0 0
      %367 = vmatpush.bf16.msra.mxu0 0
      %368 = vmatpush.bf16.msra.mxu0 0
      %369 = vmatpush.bf16.msra.mxu0 0
      %370 = vmatpush.bf16.msra.mxu0 0
      %371 = vmatpush.bf16.msra.mxu0 0
      %372 = vmatpush.bf16.msra.mxu0 0
      %373 = vmatpush.bf16.msra.mxu0 %v361
      %374 = vmatmul.bf16.gmra.mxu0 %v357
      %v375 = vpop.f32.mrf.mxu0
      %v376 = vadd.f32 %v343, %v375
      %v377 = vpop.f32.mrf.mxu0
      %v378 = vadd.f32 %v348, %v377
      %379 = vdwg.mxu0
      %380 = vmatpush.bf16.msra.mxu0 0
      %381 = vmatpush.bf16.msra.mxu0 0
      %382 = vmatpush.bf16.msra.mxu0 0
      %383 = vmatpush.bf16.msra.mxu0 0
      %384 = vmatpush.bf16.msra.mxu0 0
      %385 = vmatpush.bf16.msra.mxu0 0
      %386 = vmatpush.bf16.msra.mxu0 0
      %387 = vmatpush.bf16.msra.mxu0 %v364
      %388 = vmatmul.bf16.gmra.mxu0 %v357
      %v389 = vpop.f32.mrf.mxu0
      %v390 = vadd.f32 %v343, %v389
      %v391 = vpop.f32.mrf.mxu0
      %v392 = vadd.f32 %v348, %v391
      %393 = vdwg.mxu0
      %v394 = vmax.f32 %v376, 0.0
      %v395 = vmax.f32 %v390, 0.0
      %v396 = vmax.f32 %v378, 0.0
      %v397 = vmax.f32 %v392, 0.0
      %398 = vrot.lane.b32.xlu0 %v394, 17
      %v399 = vpop.permute.xlu0 %398
      %400 = vrot.lane.b32.xlu0 %v396, 17
      %v401 = vpop.permute.xlu0 %400
      %402 = vrot.lane.b32.xlu0 %v395, 17
      %v403 = vpop.permute.xlu0 %402
      %404 = vrot.lane.b32.xlu0 %v397, 17
      %v405 = vpop.permute.xlu0 %404
      %v406 = vlaneseq
      %v407 = vand.u32 %v406, 127
      %vm408 = vcmp.lt.s32.totalorder %v407, 17
      %v409 = vsel %vm408, %v399, %v403
      %v410 = vsel %vm408, %v401, %v405
      %v411 = vsel %vm408, %v403, %v399
      %v412 = vsel %vm408, %v405, %v401
      %v414 = vperm.slane %v295, 0
      %v415 = vperm.slane %v295, 1
      %v418 = vmul.f32 %v411, %v414
      %v419 = vmul.f32 %v409, %v415
      %v420 = vmul.f32 %v412, %v414
      %v421 = vmul.f32 %v410, %v415
      %v422 = vpack.c.bf16 %v419, %v418
      %v423 = vpack.c.bf16 %v421, %v420
      %424 = vrot.lane.b32.xlu0 %v394, 16
      %v425 = vpop.permute.xlu0 %424
      %426 = vrot.lane.b32.xlu0 %v396, 16
      %v427 = vpop.permute.xlu0 %426
      %428 = vrot.lane.b32.xlu0 %v395, 16
      %v429 = vpop.permute.xlu0 %428
      %430 = vrot.lane.b32.xlu0 %v397, 16
      %v431 = vpop.permute.xlu0 %430
      %vm432 = vcmp.lt.s32.totalorder %v407, 16
      %v433 = vsel %vm432, %v425, %v429
      %v434 = vsel %vm432, %v427, %v431
      %v435 = vsel %vm432, %v429, %v425
      %v436 = vsel %vm432, %v431, %v427
      %v438 = vperm.slane %v297, 0
      %v439 = vperm.slane %v297, 1
      %v442 = vmul.f32 %v435, %v438
      %v443 = vmul.f32 %v433, %v439
      %v444 = vmul.f32 %v436, %v438
      %v445 = vmul.f32 %v434, %v439
      %v446 = vpack.c.bf16 %v443, %v442
      %v447 = vpack.c.bf16 %v445, %v444
      %448 = vrot.lane.b32.xlu0 %v394, 15
      %v449 = vpop.permute.xlu0 %448
      %450 = vrot.lane.b32.xlu0 %v396, 15
      %v451 = vpop.permute.xlu0 %450
      %452 = vrot.lane.b32.xlu0 %v395, 15
      %v453 = vpop.permute.xlu0 %452
      %454 = vrot.lane.b32.xlu0 %v397, 15
      %v455 = vpop.permute.xlu0 %454
      %vm456 = vcmp.lt.s32.totalorder %v407, 15
      %v457 = vsel %vm456, %v449, %v453
      %v458 = vsel %vm456, %v451, %v455
      %v459 = vsel %vm456, %v453, %v449
      %v460 = vsel %vm456, %v455, %v451
      %v462 = vperm.slane %v299, 0
      %v463 = vperm.slane %v299, 1
      %v466 = vmul.f32 %v459, %v462
      %v467 = vmul.f32 %v457, %v463
      %v468 = vmul.f32 %v460, %v462
      %v469 = vmul.f32 %v458, %v463
      %v470 = vpack.c.bf16 %v467, %v466
      %v471 = vpack.c.bf16 %v469, %v468
      %472 = vrot.lane.b32.xlu0 %v394, 1
      %v473 = vpop.permute.xlu0 %472
      %474 = vrot.lane.b32.xlu0 %v396, 1
      %v475 = vpop.permute.xlu0 %474
      %476 = vrot.lane.b32.xlu0 %v395, 1
      %v477 = vpop.permute.xlu0 %476
      %478 = vrot.lane.b32.xlu0 %v397, 1
      %v479 = vpop.permute.xlu0 %478
      %vm480 = vcmp.lt.s32.totalorder %v407, 1
      %v481 = vsel %vm480, %v473, %v477
      %v482 = vsel %vm480, %v475, %v479
      %v483 = vsel %vm480, %v477, %v473
      %v484 = vsel %vm480, %v479, %v475
      %v486 = vperm.slane %v301, 0
      %v487 = vperm.slane %v301, 1
      %v490 = vmul.f32 %v483, %v486
      %v491 = vmul.f32 %v481, %v487
      %v492 = vmul.f32 %v484, %v486
      %v493 = vmul.f32 %v482, %v487
      %v494 = vpack.c.bf16 %v491, %v490
      %v495 = vpack.c.bf16 %v493, %v492
      %v496 = vpack.c.bf16 %v395, %v394
      %v497 = vpack.c.bf16 %v397, %v396
      %498 = vrot.lane.b32.xlu0 %v394, 127
      %v499 = vpop.permute.xlu0 %498
      %500 = vrot.lane.b32.xlu0 %v396, 127
      %v501 = vpop.permute.xlu0 %500
      %502 = vrot.lane.b32.xlu0 %v395, 127
      %v503 = vpop.permute.xlu0 %502
      %504 = vrot.lane.b32.xlu0 %v397, 127
      %v505 = vpop.permute.xlu0 %504
      %vm506 = vcmp.lt.s32.totalorder %v407, 127
      %v507 = vsel %vm506, %v499, %v503
      %v508 = vsel %vm506, %v501, %v505
      %v509 = vsel %vm506, %v503, %v499
      %v510 = vsel %vm506, %v505, %v501
      %v512 = vperm.slane %v303, 0
      %v513 = vperm.slane %v303, 1
      %v516 = vmul.f32 %v507, %v512
      %v517 = vmul.f32 %v509, %v513
      %v518 = vmul.f32 %v508, %v512
      %v519 = vmul.f32 %v510, %v513
      %v520 = vpack.c.bf16 %v517, %v516
      %v521 = vpack.c.bf16 %v519, %v518
      %522 = vrot.lane.b32.xlu0 %v394, 113
      %v523 = vpop.permute.xlu0 %522
      %524 = vrot.lane.b32.xlu0 %v396, 113
      %v525 = vpop.permute.xlu0 %524
      %526 = vrot.lane.b32.xlu0 %v395, 113
      %v527 = vpop.permute.xlu0 %526
      %528 = vrot.lane.b32.xlu0 %v397, 113
      %v529 = vpop.permute.xlu0 %528
      %vm530 = vcmp.lt.s32.totalorder %v407, 113
      %v531 = vsel %vm530, %v523, %v527
      %v532 = vsel %vm530, %v525, %v529
      %v533 = vsel %vm530, %v527, %v523
      %v534 = vsel %vm530, %v529, %v525
      %v536 = vperm.slane %v305, 0
      %v537 = vperm.slane %v305, 1
      %v540 = vmul.f32 %v531, %v536
      %v541 = vmul.f32 %v533, %v537
      %v542 = vmul.f32 %v532, %v536
      %v543 = vmul.f32 %v534, %v537
      %v544 = vpack.c.bf16 %v541, %v540
      %v545 = vpack.c.bf16 %v543, %v542
      %546 = vrot.lane.b32.xlu0 %v394, 112
      %v547 = vpop.permute.xlu0 %546
      %548 = vrot.lane.b32.xlu0 %v396, 112
      %v549 = vpop.permute.xlu0 %548
      %550 = vrot.lane.b32.xlu0 %v395, 112
      %v551 = vpop.permute.xlu0 %550
      %552 = vrot.lane.b32.xlu0 %v397, 112
      %v553 = vpop.permute.xlu0 %552
      %vm554 = vcmp.lt.s32.totalorder %v407, 112
      %v555 = vsel %vm554, %v547, %v551
      %v556 = vsel %vm554, %v549, %v553
      %v557 = vsel %vm554, %v551, %v547
      %v558 = vsel %vm554, %v553, %v549
      %v560 = vperm.slane %v307, 0
      %v561 = vperm.slane %v307, 1
      %v564 = vmul.f32 %v555, %v560
      %v565 = vmul.f32 %v557, %v561
      %v566 = vmul.f32 %v556, %v560
      %v567 = vmul.f32 %v558, %v561
      %v568 = vpack.c.bf16 %v565, %v564
      %v569 = vpack.c.bf16 %v567, %v566
      %570 = vrot.lane.b32.xlu0 %v394, 111
      %v571 = vpop.permute.xlu0 %570
      %572 = vrot.lane.b32.xlu0 %v396, 111
      %v573 = vpop.permute.xlu0 %572
      %574 = vrot.lane.b32.xlu0 %v395, 111
      %v575 = vpop.permute.xlu0 %574
      %576 = vrot.lane.b32.xlu0 %v397, 111
      %v577 = vpop.permute.xlu0 %576
      %vm578 = vcmp.lt.s32.totalorder %v407, 111
      %v579 = vsel %vm578, %v571, %v575
      %v580 = vsel %vm578, %v573, %v577
      %v581 = vsel %vm578, %v575, %v571
      %v582 = vsel %vm578, %v577, %v573
      %v584 = vperm.slane %v309, 0
      %v585 = vperm.slane %v309, 1
      %v588 = vmul.f32 %v579, %v584
      %v589 = vmul.f32 %v581, %v585
      %v590 = vmul.f32 %v580, %v584
      %v591 = vmul.f32 %v582, %v585
      %v592 = vpack.c.bf16 %v589, %v588
      %v593 = vpack.c.bf16 %v591, %v590
      %v596 = vunpack.c.l.b16 %v422
      %v597 = vunpack.c.h.b16 %v422
      %v598 = vunpack.c.l.b16 %v423
      %v599 = vunpack.c.h.b16 %v423
      %v600 = vpack.c.b16 %v598, %v596
      %v601 = vpack.c.b16 %v599, %v597
      %v606 = vunpack.c.l.b16 %v446
      %v607 = vunpack.c.h.b16 %v446
      %v608 = vunpack.c.l.b16 %v447
      %v609 = vunpack.c.h.b16 %v447
      %v610 = vpack.c.b16 %v608, %v606
      %v611 = vpack.c.b16 %v609, %v607
      %v616 = vunpack.c.l.b16 %v470
      %v617 = vunpack.c.h.b16 %v470
      %v618 = vunpack.c.l.b16 %v471
      %v619 = vunpack.c.h.b16 %v471
      %v620 = vpack.c.b16 %v618, %v616
      %v621 = vpack.c.b16 %v619, %v617
      %v626 = vunpack.c.l.b16 %v494
      %v627 = vunpack.c.h.b16 %v494
      %v628 = vunpack.c.l.b16 %v495
      %v629 = vunpack.c.h.b16 %v495
      %v630 = vpack.c.b16 %v628, %v626
      %v631 = vpack.c.b16 %v629, %v627
      %v636 = vunpack.c.l.b16 %v496
      %v637 = vunpack.c.h.b16 %v496
      %v638 = vunpack.c.l.b16 %v497
      %v639 = vunpack.c.h.b16 %v497
      %v640 = vpack.c.b16 %v638, %v636
      %v641 = vpack.c.b16 %v639, %v637
      %v646 = vunpack.c.l.b16 %v520
      %v647 = vunpack.c.h.b16 %v520
      %v648 = vunpack.c.l.b16 %v521
      %v649 = vunpack.c.h.b16 %v521
      %v650 = vpack.c.b16 %v648, %v646
      %v651 = vpack.c.b16 %v649, %v647
      %v656 = vunpack.c.l.b16 %v544
      %v657 = vunpack.c.h.b16 %v544
      %v658 = vunpack.c.l.b16 %v545
      %v659 = vunpack.c.h.b16 %v545
      %v660 = vpack.c.b16 %v658, %v656
      %v661 = vpack.c.b16 %v659, %v657
      %v666 = vunpack.c.l.b16 %v568
      %v667 = vunpack.c.h.b16 %v568
      %v668 = vunpack.c.l.b16 %v569
      %v669 = vunpack.c.h.b16 %v569
      %v670 = vpack.c.b16 %v668, %v666
      %v671 = vpack.c.b16 %v669, %v667
      %v676 = vunpack.c.l.b16 %v592
      %v677 = vunpack.c.h.b16 %v592
      %v678 = vunpack.c.l.b16 %v593
      %v679 = vunpack.c.h.b16 %v593
      %v680 = vpack.c.b16 %v678, %v676
      %v681 = vpack.c.b16 %v679, %v677
      %685 = vst [vmem:[#allocation1] ss:$4 sm:$0xff] %v294
      %v686 = vld.sshfl [vmem:[#allocation1] sm:$0xff pattern:$0x73625140]
      %v687 = vld.sshfl [vmem:[#allocation1 + $0x8] sm:$0xff pattern:$0x73625140]
      %vm689 = vcmask 130048
      %v690 = vsel %vm689, %v687, 0
      %692 = vmatpush.bf16.msra.mxu0 %v670
      %693 = vmatpush.bf16.msra.mxu0 %v660
      %694 = vmatpush.bf16.msra.mxu0 %v650
      %695 = vmatpush.bf16.msra.mxu0 %v640
      %696 = vmatpush.bf16.msra.mxu0 %v630
      %697 = vmatpush.bf16.msra.mxu0 %v620
      %698 = vmatpush.bf16.msra.mxu0 %v610
      %699 = vmatpush.bf16.msra.mxu0 %v600
      %700 = vmatmul.bf16.gmra.mxu0 %v686
      %v701 = vpop.f32.mrf.mxu0
      %v702 = vadd.f32 0.0, %v701
      %v703 = vpop.f32.mrf.mxu0
      %704 = vdwg.mxu0
      %705 = vmatpush.bf16.msra.mxu0 0
      %706 = vmatpush.bf16.msra.mxu0 0
      %707 = vmatpush.bf16.msra.mxu0 0
      %708 = vmatpush.bf16.msra.mxu0 0
      %709 = vmatpush.bf16.msra.mxu0 0
      %710 = vmatpush.bf16.msra.mxu0 0
      %711 = vmatpush.bf16.msra.mxu0 0
      %712 = vmatpush.bf16.msra.mxu0 %v680
      %713 = vmatmul.bf16.gmra.mxu0 %v690
      %v714 = vpop.f32.mrf.mxu0
      %v715 = vadd.f32 %v702, %v714
      %v716 = vpop.f32.mrf.mxu0
      %717 = vdwg.mxu0
      %718 = vmatpush.bf16.msra.mxu0 %v671
      %719 = vmatpush.bf16.msra.mxu0 %v661
      %720 = vmatpush.bf16.msra.mxu0 %v651
      %721 = vmatpush.bf16.msra.mxu0 %v641
      %722 = vmatpush.bf16.msra.mxu0 %v631
      %723 = vmatpush.bf16.msra.mxu0 %v621
      %724 = vmatpush.bf16.msra.mxu0 %v611
      %725 = vmatpush.bf16.msra.mxu0 %v601
      %726 = vmatmul.bf16.gmra.mxu0 %v686
      %v727 = vpop.f32.mrf.mxu0
      %v728 = vadd.f32 0.0, %v727
      %v729 = vpop.f32.mrf.mxu0
      %730 = vdwg.mxu0
      %731 = vmatpush.bf16.msra.mxu0 0
      %732 = vmatpush.bf16.msra.mxu0 0
      %733 = vmatpush.bf16.msra.mxu0 0
      %734 = vmatpush.bf16.msra.mxu0 0
      %735 = vmatpush.bf16.msra.mxu0 0
      %736 = vmatpush.bf16.msra.mxu0 0
      %737 = vmatpush.bf16.msra.mxu0 0
      %738 = vmatpush.bf16.msra.mxu0 %v681
      %739 = vmatmul.bf16.gmra.mxu0 %v690
      %v740 = vpop.f32.mrf.mxu0
      %v741 = vadd.f32 %v728, %v740
      %v742 = vpop.f32.mrf.mxu0
      %743 = vdwg.mxu0
      %745 = vst [vmem:[#allocation1] ss:$2 sm:$0xff] %v310
      %v746 = vld.sshfl [vmem:[#allocation1] sm:$0xff pattern:$0x75316420]
      %v747 = vld.sshfl [vmem:[#allocation1 + $0x8] sm:$0xff pattern:$0x75316420]
      %v752 = vrot.slane %v715, 4
      %v753 = vrot.slane %v741, 4
      %vm756 = vcmask 1043456
      %v757 = vsel %vm756, %v746, %v752
      %v758 = vsel %vm756, %v747, %v753
      %759 = vst [vmem:[%s285] sm:$0xff] %v757
      %760 = vst [vmem:[%s285 + $0x8] sm:$0xff] %v758
      %s761 = scalar_lea.vmem %s278, 8
      %v762 = vld [vmem:[%s761] sm:$0xff]
      %v763 = vmul.f32 %v762, %v318
      %v764 = vadd.f32 %v763, %v328
      %v765 = vmax.f32 %v764, 0.0
      %767 = vst [vmem:[#allocation1] ss:$2 sm:$0xff] %v765
      %v768 = vld.sshfl [vmem:[#allocation1] sm:$0xff pattern:$0x75316420]
      %v769 = vld.sshfl [vmem:[#allocation1 + $0x8] sm:$0xff pattern:$0x75316420]
      %v772 = vpack.c.bf16 %v768, %v768
      %v773 = vpack.c.bf16 %v769, %v769
      %v775 = vsel %vm359, %v772, 0
      %v778 = vsel %vm359, %v773, 0
      %780 = vmatpush.bf16.msra.mxu0 0
      %781 = vmatpush.bf16.msra.mxu0 0
      %782 = vmatpush.bf16.msra.mxu0 0
      %783 = vmatpush.bf16.msra.mxu0 0
      %784 = vmatpush.bf16.msra.mxu0 0
      %785 = vmatpush.bf16.msra.mxu0 0
      %786 = vmatpush.bf16.msra.mxu0 0
      %787 = vmatpush.bf16.msra.mxu0 %v775
      %788 = vmatmul.bf16.gmra.mxu0 %v357
      %v789 = vpop.f32.mrf.mxu0
      %v790 = vadd.f32 %v343, %v789
      %v791 = vpop.f32.mrf.mxu0
      %v792 = vadd.f32 %v348, %v791
      %793 = vdwg.mxu0
      %794 = vmatpush.bf16.msra.mxu0 0
      %795 = vmatpush.bf16.msra.mxu0 0
      %796 = vmatpush.bf16.msra.mxu0 0
      %797 = vmatpush.bf16.msra.mxu0 0
      %798 = vmatpush.bf16.msra.mxu0 0
      %799 = vmatpush.bf16.msra.mxu0 0
      %800 = vmatpush.bf16.msra.mxu0 0
      %801 = vmatpush.bf16.msra.mxu0 %v778
      %802 = vmatmul.bf16.gmra.mxu0 %v357
      %v803 = vpop.f32.mrf.mxu0
      %v804 = vadd.f32 %v343, %v803
      %v805 = vpop.f32.mrf.mxu0
      %v806 = vadd.f32 %v348, %v805
      %807 = vdwg.mxu0
      %v808 = vmax.f32 %v790, 0.0
      %v809 = vmax.f32 %v804, 0.0
      %v810 = vmax.f32 %v792, 0.0
      %v811 = vmax.f32 %v806, 0.0
      %812 = vrot.lane.b32.xlu0 %v808, 17
      %v813 = vpop.permute.xlu0 %812
      %814 = vrot.lane.b32.xlu0 %v810, 17
      %v815 = vpop.permute.xlu0 %814
      %816 = vrot.lane.b32.xlu0 %v809, 17
      %v817 = vpop.permute.xlu0 %816
      %818 = vrot.lane.b32.xlu0 %v811, 17
      %v819 = vpop.permute.xlu0 %818
      %v820 = vsel %vm408, %v813, %v817
      %v821 = vsel %vm408, %v815, %v819
      %v822 = vsel %vm408, %v817, %v813
      %v823 = vsel %vm408, %v819, %v815
      %v824 = vmul.f32 %v822, %v414
      %v825 = vmul.f32 %v820, %v415
      %v826 = vmul.f32 %v823, %v414
      %v827 = vmul.f32 %v821, %v415
      %v828 = vpack.c.bf16 %v825, %v824
      %v829 = vpack.c.bf16 %v827, %v826
      %830 = vrot.lane.b32.xlu0 %v808, 16
      %v831 = vpop.permute.xlu0 %830
      %832 = vrot.lane.b32.xlu0 %v810, 16
      %v833 = vpop.permute.xlu0 %832
      %834 = vrot.lane.b32.xlu0 %v809, 16
      %v835 = vpop.permute.xlu0 %834
      %836 = vrot.lane.b32.xlu0 %v811, 16
      %v837 = vpop.permute.xlu0 %836
      %v838 = vsel %vm432, %v831, %v835
      %v839 = vsel %vm432, %v833, %v837
      %v840 = vsel %vm432, %v835, %v831
      %v841 = vsel %vm432, %v837, %v833
      %v842 = vmul.f32 %v840, %v438
      %v843 = vmul.f32 %v838, %v439
      %v844 = vmul.f32 %v841, %v438
      %v845 = vmul.f32 %v839, %v439
      %v846 = vpack.c.bf16 %v843, %v842
      %v847 = vpack.c.bf16 %v845, %v844
      %848 = vrot.lane.b32.xlu0 %v808, 15
      %v849 = vpop.permute.xlu0 %848
      %850 = vrot.lane.b32.xlu0 %v810, 15
      %v851 = vpop.permute.xlu0 %850
      %852 = vrot.lane.b32.xlu0 %v809, 15
      %v853 = vpop.permute.xlu0 %852
      %854 = vrot.lane.b32.xlu0 %v811, 15
      %v855 = vpop.permute.xlu0 %854
      %v856 = vsel %vm456, %v849, %v853
      %v857 = vsel %vm456, %v851, %v855
      %v858 = vsel %vm456, %v853, %v849
      %v859 = vsel %vm456, %v855, %v851
      %v860 = vmul.f32 %v858, %v462
      %v861 = vmul.f32 %v856, %v463
      %v862 = vmul.f32 %v859, %v462
      %v863 = vmul.f32 %v857, %v463
      %v864 = vpack.c.bf16 %v861, %v860
      %v865 = vpack.c.bf16 %v863, %v862
      %866 = vrot.lane.b32.xlu0 %v808, 1
      %v867 = vpop.permute.xlu0 %866
      %868 = vrot.lane.b32.xlu0 %v810, 1
      %v869 = vpop.permute.xlu0 %868
      %870 = vrot.lane.b32.xlu0 %v809, 1
      %v871 = vpop.permute.xlu0 %870
      %872 = vrot.lane.b32.xlu0 %v811, 1
      %v873 = vpop.permute.xlu0 %872
      %v874 = vsel %vm480, %v867, %v871
      %v875 = vsel %vm480, %v869, %v873
      %v876 = vsel %vm480, %v871, %v867
      %v877 = vsel %vm480, %v873, %v869
      %v878 = vmul.f32 %v876, %v486
      %v879 = vmul.f32 %v874, %v487
      %v880 = vmul.f32 %v877, %v486
      %v881 = vmul.f32 %v875, %v487
      %v882 = vpack.c.bf16 %v879, %v878
      %v883 = vpack.c.bf16 %v881, %v880
      %v884 = vpack.c.bf16 %v809, %v808
      %v885 = vpack.c.bf16 %v811, %v810
      %886 = vrot.lane.b32.xlu0 %v808, 127
      %v887 = vpop.permute.xlu0 %886
      %888 = vrot.lane.b32.xlu0 %v810, 127
      %v889 = vpop.permute.xlu0 %888
      %890 = vrot.lane.b32.xlu0 %v809, 127
      %v891 = vpop.permute.xlu0 %890
      %892 = vrot.lane.b32.xlu0 %v811, 127
      %v893 = vpop.permute.xlu0 %892
      %v894 = vsel %vm506, %v887, %v891
      %v895 = vsel %vm506, %v889, %v893
      %v896 = vsel %vm506, %v891, %v887
      %v897 = vsel %vm506, %v893, %v889
      %v898 = vmul.f32 %v894, %v512
      %v899 = vmul.f32 %v896, %v513
      %v900 = vmul.f32 %v895, %v512
      %v901 = vmul.f32 %v897, %v513
      %v902 = vpack.c.bf16 %v899, %v898
      %v903 = vpack.c.bf16 %v901, %v900
      %904 = vrot.lane.b32.xlu0 %v808, 113
      %v905 = vpop.permute.xlu0 %904
      %906 = vrot.lane.b32.xlu0 %v810, 113
      %v907 = vpop.permute.xlu0 %906
      %908 = vrot.lane.b32.xlu0 %v809, 113
      %v909 = vpop.permute.xlu0 %908
      %910 = vrot.lane.b32.xlu0 %v811, 113
      %v911 = vpop.permute.xlu0 %910
      %v912 = vsel %vm530, %v905, %v909
      %v913 = vsel %vm530, %v907, %v911
      %v914 = vsel %vm530, %v909, %v905
      %v915 = vsel %vm530, %v911, %v907
      %v916 = vmul.f32 %v912, %v536
      %v917 = vmul.f32 %v914, %v537
      %v918 = vmul.f32 %v913, %v536
      %v919 = vmul.f32 %v915, %v537
      %v920 = vpack.c.bf16 %v917, %v916
      %v921 = vpack.c.bf16 %v919, %v918
      %922 = vrot.lane.b32.xlu0 %v808, 112
      %v923 = vpop.permute.xlu0 %922
      %924 = vrot.lane.b32.xlu0 %v810, 112
      %v925 = vpop.permute.xlu0 %924
      %926 = vrot.lane.b32.xlu0 %v809, 112
      %v927 = vpop.permute.xlu0 %926
      %928 = vrot.lane.b32.xlu0 %v811, 112
      %v929 = vpop.permute.xlu0 %928
      %v930 = vsel %vm554, %v923, %v927
      %v931 = vsel %vm554, %v925, %v929
      %v932 = vsel %vm554, %v927, %v923
      %v933 = vsel %vm554, %v929, %v925
      %v934 = vmul.f32 %v930, %v560
      %v935 = vmul.f32 %v932, %v561
      %v936 = vmul.f32 %v931, %v560
      %v937 = vmul.f32 %v933, %v561
      %v938 = vpack.c.bf16 %v935, %v934
      %v939 = vpack.c.bf16 %v937, %v936
      %940 = vrot.lane.b32.xlu0 %v808, 111
      %v941 = vpop.permute.xlu0 %940
      %942 = vrot.lane.b32.xlu0 %v810, 111
      %v943 = vpop.permute.xlu0 %942
      %944 = vrot.lane.b32.xlu0 %v809, 111
      %v945 = vpop.permute.xlu0 %944
      %946 = vrot.lane.b32.xlu0 %v811, 111
      %v947 = vpop.permute.xlu0 %946
      %v948 = vsel %vm578, %v941, %v945
      %v949 = vsel %vm578, %v943, %v947
      %v950 = vsel %vm578, %v945, %v941
      %v951 = vsel %vm578, %v947, %v943
      %v952 = vmul.f32 %v948, %v584
      %v953 = vmul.f32 %v950, %v585
      %v954 = vmul.f32 %v949, %v584
      %v955 = vmul.f32 %v951, %v585
      %v956 = vpack.c.bf16 %v953, %v952
      %v957 = vpack.c.bf16 %v955, %v954
      %v960 = vunpack.c.l.b16 %v828
      %v961 = vunpack.c.h.b16 %v828
      %v962 = vunpack.c.l.b16 %v829
      %v963 = vunpack.c.h.b16 %v829
      %v964 = vpack.c.b16 %v962, %v960
      %v965 = vpack.c.b16 %v963, %v961
      %v970 = vunpack.c.l.b16 %v846
      %v971 = vunpack.c.h.b16 %v846
      %v972 = vunpack.c.l.b16 %v847
      %v973 = vunpack.c.h.b16 %v847
      %v974 = vpack.c.b16 %v972, %v970
      %v975 = vpack.c.b16 %v973, %v971
      %v980 = vunpack.c.l.b16 %v864
      %v981 = vunpack.c.h.b16 %v864
      %v982 = vunpack.c.l.b16 %v865
      %v983 = vunpack.c.h.b16 %v865
      %v984 = vpack.c.b16 %v982, %v980
      %v985 = vpack.c.b16 %v983, %v981
      %v990 = vunpack.c.l.b16 %v882
      %v991 = vunpack.c.h.b16 %v882
      %v992 = vunpack.c.l.b16 %v883
      %v993 = vunpack.c.h.b16 %v883
      %v994 = vpack.c.b16 %v992, %v990
      %v995 = vpack.c.b16 %v993, %v991
      %v1000 = vunpack.c.l.b16 %v884
      %v1001 = vunpack.c.h.b16 %v884
      %v1002 = vunpack.c.l.b16 %v885
      %v1003 = vunpack.c.h.b16 %v885
      %v1004 = vpack.c.b16 %v1002, %v1000
      %v1005 = vpack.c.b16 %v1003, %v1001
      %v1010 = vunpack.c.l.b16 %v902
      %v1011 = vunpack.c.h.b16 %v902
      %v1012 = vunpack.c.l.b16 %v903
      %v1013 = vunpack.c.h.b16 %v903
      %v1014 = vpack.c.b16 %v1012, %v1010
      %v1015 = vpack.c.b16 %v1013, %v1011
      %v1020 = vunpack.c.l.b16 %v920
      %v1021 = vunpack.c.h.b16 %v920
      %v1022 = vunpack.c.l.b16 %v921
      %v1023 = vunpack.c.h.b16 %v921
      %v1024 = vpack.c.b16 %v1022, %v1020
      %v1025 = vpack.c.b16 %v1023, %v1021
      %v1030 = vunpack.c.l.b16 %v938
      %v1031 = vunpack.c.h.b16 %v938
      %v1032 = vunpack.c.l.b16 %v939
      %v1033 = vunpack.c.h.b16 %v939
      %v1034 = vpack.c.b16 %v1032, %v1030
      %v1035 = vpack.c.b16 %v1033, %v1031
      %v1040 = vunpack.c.l.b16 %v956
      %v1041 = vunpack.c.h.b16 %v956
      %v1042 = vunpack.c.l.b16 %v957
      %v1043 = vunpack.c.h.b16 %v957
      %v1044 = vpack.c.b16 %v1042, %v1040
      %v1045 = vpack.c.b16 %v1043, %v1041
      %1048 = vst [vmem:[#allocation1] ss:$4 sm:$0xff] %v294
      %v1049 = vld.sshfl [vmem:[#allocation1] sm:$0xff pattern:$0x73625140]
      %v1050 = vld.sshfl [vmem:[#allocation1 + $0x8] sm:$0xff pattern:$0x73625140]
      %v1052 = vsel %vm689, %v1050, 0
      %1054 = vmatpush.bf16.msra.mxu0 %v1034
      %1055 = vmatpush.bf16.msra.mxu0 %v1024
      %1056 = vmatpush.bf16.msra.mxu0 %v1014
      %1057 = vmatpush.bf16.msra.mxu0 %v1004
      %1058 = vmatpush.bf16.msra.mxu0 %v994
      %1059 = vmatpush.bf16.msra.mxu0 %v984
      %1060 = vmatpush.bf16.msra.mxu0 %v974
      %1061 = vmatpush.bf16.msra.mxu0 %v964
      %1062 = vmatmul.bf16.gmra.mxu0 %v1049
      %v1063 = vpop.f32.mrf.mxu0
      %v1064 = vadd.f32 0.0, %v1063
      %v1065 = vpop.f32.mrf.mxu0
      %1066 = vdwg.mxu0
      %1067 = vmatpush.bf16.msra.mxu0 0
      %1068 = vmatpush.bf16.msra.mxu0 0
      %1069 = vmatpush.bf16.msra.mxu0 0
      %1070 = vmatpush.bf16.msra.mxu0 0
      %1071 = vmatpush.bf16.msra.mxu0 0
      %1072 = vmatpush.bf16.msra.mxu0 0
      %1073 = vmatpush.bf16.msra.mxu0 0
      %1074 = vmatpush.bf16.msra.mxu0 %v1044
      %1075 = vmatmul.bf16.gmra.mxu0 %v1052
      %v1076 = vpop.f32.mrf.mxu0
      %v1077 = vadd.f32 %v1064, %v1076
      %v1078 = vpop.f32.mrf.mxu0
      %1079 = vdwg.mxu0
      %1080 = vmatpush.bf16.msra.mxu0 %v1035
      %1081 = vmatpush.bf16.msra.mxu0 %v1025
      %1082 = vmatpush.bf16.msra.mxu0 %v1015
      %1083 = vmatpush.bf16.msra.mxu0 %v1005
      %1084 = vmatpush.bf16.msra.mxu0 %v995
      %1085 = vmatpush.bf16.msra.mxu0 %v985
      %1086 = vmatpush.bf16.msra.mxu0 %v975
      %1087 = vmatpush.bf16.msra.mxu0 %v965
      %1088 = vmatmul.bf16.gmra.mxu0 %v1049
      %v1089 = vpop.f32.mrf.mxu0
      %v1090 = vadd.f32 0.0, %v1089
      %v1091 = vpop.f32.mrf.mxu0
      %1092 = vdwg.mxu0
      %1093 = vmatpush.bf16.msra.mxu0 0
      %1094 = vmatpush.bf16.msra.mxu0 0
      %1095 = vmatpush.bf16.msra.mxu0 0
      %1096 = vmatpush.bf16.msra.mxu0 0
      %1097 = vmatpush.bf16.msra.mxu0 0
      %1098 = vmatpush.bf16.msra.mxu0 0
      %1099 = vmatpush.bf16.msra.mxu0 0
      %1100 = vmatpush.bf16.msra.mxu0 %v1045
      %1101 = vmatmul.bf16.gmra.mxu0 %v1052
      %v1102 = vpop.f32.mrf.mxu0
      %v1103 = vadd.f32 %v1090, %v1102
      %v1104 = vpop.f32.mrf.mxu0
      %1105 = vdwg.mxu0
      %1107 = vst [vmem:[#allocation1] ss:$2 sm:$0xff] %v762
      %v1108 = vld.sshfl [vmem:[#allocation1] sm:$0xff pattern:$0x75316420]
      %v1109 = vld.sshfl [vmem:[#allocation1 + $0x8] sm:$0xff pattern:$0x75316420]
      %v1114 = vrot.slane %v1077, 4
      %v1115 = vrot.slane %v1103, 4
      %v1118 = vsel %vm756, %v1108, %v1114
      %v1119 = vsel %vm756, %v1109, %v1115
      %s1120 = scalar_lea.vmem %s285, 16
      %1121 = vst [vmem:[%s1120] sm:$0xff] %v1118
      %1122 = vst [vmem:[%s1120 + $0x8] sm:$0xff] %v1119
      %s1123 = smul.u32 2, %s18
      %p1124 = scmp.lt.s32.totalorder %s1123, 3
      %s1125 = scalar_select %p1124, %s1123, 3
      %s1126 = smul.addr %s1125, 2
      %s1127 = smul.addr %s1126, 8
      %s1128 = scalar_lea.vmem %s7, %s1127
      // Predicated region
      $region49: #{bottleneck_block.1} parent=47 // pred_check
        %p1129 = pneg %p188
      $region50: #{bottleneck_block.1} parent=47 // pred_check_branch
        %1131 = sbr.rel (%p1129) target = $region52
      $region51: #{bottleneck_block.1} parent=47 // pred_region
        %s1132 = smul.u32 2, %s18
      $region52: #{bottleneck_block.1} parent=47 // pred_fallthru
        _
    $region48: #{bottleneck_block.1} parent=5 // pred_fallthru
      _
    %p1133 = scmp.le.s32.totalorder 2, %s13
    // Predicated region
    $region53: #{bottleneck_block.1} parent=5 // pred_check
      %p1134 = pneg %p1133
    $region54: #{bottleneck_block.1} parent=5 // pred_check_branch
      %1136 = sbr.rel (%p1134) target = $region56
    $region55: #{bottleneck_block.1} parent=5 // pred_region
      %s1137 = ssub.s32 %s13, 2
      // Predicated region
      $region57: #{bottleneck_block.1} parent=55 // pred_check
        %p1138 = pneg %p194
      $region58: #{bottleneck_block.1} parent=55 // pred_check_branch
        %1140 = sbr.rel (%p1138) target = $region60
      $region59: #{bottleneck_block.1} parent=55 // pred_region
        %s1141 = smul.u32 2, %s19
        %p1142 = scmp.lt.s32.totalorder %s1141, 3
        %s1143 = scalar_select %p1142, %s1141, 3
        %s1144 = smul.addr %s1143, 2
        %s1145 = smul.addr %s1144, 8
        %s1146 = scalar_lea.vmem %s7, %s1145
      $region60: #{bottleneck_block.1} parent=55 // pred_fallthru
        _
    $region56: #{bottleneck_block.1} parent=5 // pred_fallthru
      _
  $region6: #{bottleneck_block.1} parent=0 // loop_footer
    %s17 = sadd.s32 1, %s13
  $region7: #{bottleneck_block.1} parent=0 // loop_footer_branch
    %12 = sbr.rel target = $region3
  $region8: #{bottleneck_block.1} parent=0 // loop_exit
    _

</llo_original>
